<compile_context>
chip_gen: v5e
topology: v5e:2x2
jax: 0.10.0
libtpu: 0.0.40
codegen_flags: <defaults>
</compile_context>

<pallas_src>
import functools

import jax
import jax.numpy as jnp
from jax.experimental import pallas as pl
from jax.experimental.pallas import tpu as pltpu

LANE = 128
SUBLANE = 8


def _ceil_to(n, m):
    return ((n + m - 1) // m) * m


def _leaky_relu(x, slope=0.2):
    # slope < 1  =>  max(x, slope * x) == leaky_relu(x, slope)
    return jnp.maximum(x, slope * x)


# -----------------------------------------------------------------------------
# Kernel: one batch tile, all 4 layers fused.  Weights bf16, biases f32,
# MXU accumulation f32, epilogue (leaky_relu / tanh) in f32 on the VPU/EUP.
# -----------------------------------------------------------------------------
def generator_kernel(x_ref, w1_ref, w2_ref, w3_ref, w4_ref, b_ref, o_ref):
    def linear(h_bf16, w_ref, k):
        z = jnp.dot(h_bf16, w_ref[...], preferred_element_type=jnp.float32)
        return z + b_ref[k:k + 1, :w_ref.shape[1]]

    # fc1 (x tile is already bf16 -> no cast); dropout = identity (eval mode)
    h = _leaky_relu(linear(x_ref[...], w1_ref, 0))
    h = _leaky_relu(linear(h.astype(jnp.bfloat16), w2_ref, 1))   # fc2
    h = _leaky_relu(linear(h.astype(jnp.bfloat16), w3_ref, 2))   # fc3
    z = linear(h.astype(jnp.bfloat16), w4_ref, 3)                # fc4
    o_ref[...] = jnp.tanh(z).astype(o_ref.dtype)


# -----------------------------------------------------------------------------
# Parameter packing: pad every weight to lane multiples, cast to bf16, and
# pack the four biases into one lane-dense f32 slab.  Done once, offline.
# -----------------------------------------------------------------------------
def prepare_params(params_f32):
    """params_f32 = (w1, b1, ..., w4, b4), weights stored (in, out)."""
    ws = params_f32[0::2]
    bs = params_f32[1::2]

    padded_ws = []
    dims = []
    for w in ws:
        fi, fo = w.shape
        fip, fop = _ceil_to(fi, LANE), _ceil_to(fo, LANE)
        wp = jnp.zeros((fip, fop), jnp.bfloat16).at[:fi, :fo].set(
            w.astype(jnp.bfloat16))
        padded_ws.append(wp)
        dims.append((fi, fo, fip, fop))

    max_out = max(d[3] for d in dims)
    bias_slab = jnp.zeros((len(bs), max_out), jnp.float32)
    for k, b in enumerate(bs):
        bias_slab = bias_slab.at[k, :b.shape[-1]].set(
            b.reshape(-1).astype(jnp.float32))

    # dims as a tuple-of-tuples so it can be a static (hashable) jit argument.
    return tuple(padded_ws), bias_slab, tuple(dims)


def _choose_block_b(batch):
    """Single grid step for small/medium batches (no per-step overhead on the
    single-TC v5e/v6e); 512-row tiles for large batches, keeping the grid
    length >= 2 so v7x's two TensorCores can split the 'parallel' axis."""
    b = _ceil_to(max(batch, SUBLANE), SUBLANE)
    return b if b <= 1024 else 512


# -----------------------------------------------------------------------------
# Core path: padded-layout in, padded-layout out (no HBM pad/slice copies).
# xp: (Bp, d_in_p) bf16 with Bp % block_b == 0 and d_in_p % 128 == 0.
# Returns (Bp, d_out_p) bf16.
# -----------------------------------------------------------------------------
def generator_forward_padded(xp, ws, bias_slab, *, block_b):
    w1p, w2p, w3p, w4p = ws
    Bp, d_in_p = xp.shape
    d_out_p = w4p.shape[1]
    grid = (Bp // block_b,)
    resident = lambda i: (0, 0)   # weights/biases: same block every grid step

    return pl.pallas_call(
        generator_kernel,
        out_shape=jax.ShapeDtypeStruct((Bp, d_out_p), jnp.bfloat16),
        grid_spec=pltpu.PrefetchScalarGridSpec(
            num_scalar_prefetch=0,
            grid=grid,
            in_specs=[
                pl.BlockSpec((block_b, d_in_p), lambda i: (i, 0)),  # x tile
                pl.BlockSpec(w1p.shape, resident),
                pl.BlockSpec(w2p.shape, resident),
                pl.BlockSpec(w3p.shape, resident),
                pl.BlockSpec(w4p.shape, resident),
                pl.BlockSpec(bias_slab.shape, resident),
            ],
            out_specs=pl.BlockSpec((block_b, d_out_p), lambda i: (i, 0)),
        ),
        compiler_params=pltpu.CompilerParams(
            dimension_semantics=("parallel",),      # v7x: shard batch over 2 TCs
            vmem_limit_bytes=32 * 1024 * 1024,      # safe on v5e/v6e/v7x
        ),
    )(xp, w1p, w2p, w3p, w4p, bias_slab)


# -----------------------------------------------------------------------------
# Convenience wrapper: pad/cast x, run the kernel, slice the output.  Jitted so
# the pad/slice copies fuse with neighbouring XLA ops instead of being
# standalone full-tensor HBM round-trips around a latency-bound kernel.
# -----------------------------------------------------------------------------
@functools.partial(jax.jit, static_argnames=("dims", "block_b"))
def _forward_impl(x, ws, bias_slab, dims, block_b):
    B, d_in = x.shape
    d_in_p = dims[0][2]
    d_out = dims[-1][1]
    Bp = _ceil_to(max(B, SUBLANE), block_b)

    xp = jnp.zeros((Bp, d_in_p), jnp.bfloat16).at[:B, :d_in].set(
        x.astype(jnp.bfloat16))
    out_p = generator_forward_padded(xp, ws, bias_slab, block_b=block_b)
    return out_p[:B, :d_out]


def generator_forward(x, packed, *, block_b=None, training=False):
    if training:
        # TODO(synk): training-mode Dropout(0.3) not implemented.
        raise NotImplementedError(
            "training-mode Dropout(0.3) is not implemented in this kernel")
    ws, bias_slab, dims = packed
    if block_b is None:
        block_b = _choose_block_b(x.shape[0])
    return _forward_impl(x, ws, bias_slab, dims, block_b)


# -----------------------------------------------------------------------------
# Deterministic init mimicking nn.Linear (U[-1/sqrt(fan_in), 1/sqrt(fan_in)]).
# -----------------------------------------------------------------------------
def init_params(key, input_dim, hidden_size, output_size):
    layer_dims = [
        (input_dim, hidden_size),
        (hidden_size, hidden_size * 2),
        (hidden_size * 2, hidden_size * 4),
        (hidden_size * 4, output_size),
    ]
    params = []
    for fan_in, fan_out in layer_dims:
        key, kw, kb = jax.random.split(key, 3)
        bound = 1.0 / (fan_in ** 0.5)
        w = jax.random.uniform(kw, (fan_in, fan_out), jnp.float32, -bound, bound)
        b = jax.random.uniform(kb, (1, fan_out), jnp.float32, -bound, bound)
        params += [w, b]
    return tuple(params)


if __name__ == "__main__":
    # Shapes consistent with the module's forward; small latent / hidden dims.
    batch = 256
    input_dim = 32      # latent z dim
    hidden_size = 32    # -> layers 32 -> 64 -> 128
    output_size = 64    # generated "image" flattened size

    key = jax.random.PRNGKey(0)
    key, kx = jax.random.split(key)
    x = jax.random.normal(kx, (batch, input_dim), jnp.float32)

    params = init_params(key, input_dim, hidden_size, output_size)
    packed = prepare_params(params)

    out = generator_forward(x, packed)          # block_b auto -> single step
    jax.block_until_ready(out)

    # Pure-JAX reference mirroring the kernel's numerics (bf16 weights /
    # activations into the MXU, f32 accumulation, f32 epilogue, bf16 output).
    def ref_forward(x, p):
        w1, b1, w2, b2, w3, b3, w4, b4 = p

        def lin(h, w, b):
            return jnp.dot(h.astype(jnp.bfloat16), w.astype(jnp.bfloat16),
                           preferred_element_type=jnp.float32) + b

        h = _leaky_relu(lin(x, w1, b1))
        h = _leaky_relu(lin(h, w2, b2))
        h = _leaky_relu(lin(h, w3, b3))
        return jnp.tanh(lin(h, w4, b4)).astype(jnp.bfloat16)

    expected = ref_forward(x, params)

    assert out.shape == (batch, output_size), out.shape
    assert out.dtype == jnp.bfloat16, out.dtype
    err = jnp.max(jnp.abs(out.astype(jnp.float32) - expected.astype(jnp.float32)))
    assert jnp.allclose(out.astype(jnp.float32), expected.astype(jnp.float32),
                        atol=2e-2, rtol=0.0), float(err)

    print("KERNEL_OK")
</pallas_src>

<mosaic_0001>
module attributes {stable_mosaic.version = 11 : i64} {
  func.func @generator_kernel(%arg0: i32, %arg1: memref<256x128xbf16, #tpu.memory_space<vmem>>, %arg2: memref<128x128xbf16, #tpu.memory_space<vmem>>, %arg3: memref<128x128xbf16, #tpu.memory_space<vmem>>, %arg4: memref<128x128xbf16, #tpu.memory_space<vmem>>, %arg5: memref<128x128xbf16, #tpu.memory_space<vmem>>, %arg6: memref<4x128xf32, #tpu.memory_space<vmem>>, %arg7: memref<256x128xbf16, #tpu.memory_space<vmem>>) attributes {dimension_semantics = [#tpu.dimension_semantics<parallel>], iteration_bounds = array<i64: 1>, scalar_prefetch = 0 : i64, scratch_operands = 0 : i64, tpu.core_type = #tpu.core_type<tc>, window_params = [{transform_indices = @transform_0, window_bounds = array<i64: 256, 128>}, {pipeline_mode = #tpu.pipeline_mode<synchronous>, transform_indices = @transform_1, window_bounds = array<i64: 128, 128>}, {pipeline_mode = #tpu.pipeline_mode<synchronous>, transform_indices = @transform_2, window_bounds = array<i64: 128, 128>}, {pipeline_mode = #tpu.pipeline_mode<synchronous>, transform_indices = @transform_3, window_bounds = array<i64: 128, 128>}, {pipeline_mode = #tpu.pipeline_mode<synchronous>, transform_indices = @transform_4, window_bounds = array<i64: 128, 128>}, {pipeline_mode = #tpu.pipeline_mode<synchronous>, transform_indices = @transform_5, window_bounds = array<i64: 4, 128>}, {transform_indices = @transform_6, window_bounds = array<i64: 256, 128>}]} {
    %c0 = arith.constant 0 : index
    %c0_0 = arith.constant 0 : index
    %0 = vector.load %arg1[%c0, %c0_0] : memref<256x128xbf16, #tpu.memory_space<vmem>>, vector<256x128xbf16>
    %c0_1 = arith.constant 0 : index
    %c0_2 = arith.constant 0 : index
    %1 = vector.load %arg2[%c0_1, %c0_2] : memref<128x128xbf16, #tpu.memory_space<vmem>>, vector<128x128xbf16>
    %cst = arith.constant dense<0.000000e+00> : vector<256x128xf32>
    %2 = tpu.matmul %0, %1, %cst {dimension_numbers = #tpu.dot_dimension_numbers<[1], [0], [0], [1], [0, 0, 1, 1], [], []>} : vector<256x128xbf16>, vector<128x128xbf16>, vector<256x128xf32> -> vector<256x128xf32>
    %c0_3 = arith.constant 0 : index
    %c0_4 = arith.constant 0 : index
    %3 = vector.load %arg6[%c0_3, %c0_4] : memref<4x128xf32, #tpu.memory_space<vmem>>, vector<1x128xf32>
    %4 = vector.broadcast %3 : vector<1x128xf32> to vector<256x128xf32>
    %5 = arith.addf %2, %4 : vector<256x128xf32>
    %cst_5 = arith.constant 2.000000e-01 : f32
    %6 = vector.broadcast %cst_5 : f32 to vector<256x128xf32>
    %7 = arith.mulf %6, %5 : vector<256x128xf32>
    %8 = arith.maximumf %5, %7 : vector<256x128xf32>
    %9 = arith.truncf %8 : vector<256x128xf32> to vector<256x128xbf16>
    %c0_6 = arith.constant 0 : index
    %c0_7 = arith.constant 0 : index
    %10 = vector.load %arg3[%c0_6, %c0_7] : memref<128x128xbf16, #tpu.memory_space<vmem>>, vector<128x128xbf16>
    %cst_8 = arith.constant dense<0.000000e+00> : vector<256x128xf32>
    %11 = tpu.matmul %9, %10, %cst_8 {dimension_numbers = #tpu.dot_dimension_numbers<[1], [0], [0], [1], [0, 0, 1, 1], [], []>} : vector<256x128xbf16>, vector<128x128xbf16>, vector<256x128xf32> -> vector<256x128xf32>
    %c1 = arith.constant 1 : index
    %c0_9 = arith.constant 0 : index
    %12 = vector.load %arg6[%c1, %c0_9] : memref<4x128xf32, #tpu.memory_space<vmem>>, vector<1x128xf32>
    %13 = vector.broadcast %12 : vector<1x128xf32> to vector<256x128xf32>
    %14 = arith.addf %11, %13 : vector<256x128xf32>
    %cst_10 = arith.constant 2.000000e-01 : f32
    %15 = vector.broadcast %cst_10 : f32 to vector<256x128xf32>
    %16 = arith.mulf %15, %14 : vector<256x128xf32>
    %17 = arith.maximumf %14, %16 : vector<256x128xf32>
    %18 = arith.truncf %17 : vector<256x128xf32> to vector<256x128xbf16>
    %c0_11 = arith.constant 0 : index
    %c0_12 = arith.constant 0 : index
    %19 = vector.load %arg4[%c0_11, %c0_12] : memref<128x128xbf16, #tpu.memory_space<vmem>>, vector<128x128xbf16>
    %cst_13 = arith.constant dense<0.000000e+00> : vector<256x128xf32>
    %20 = tpu.matmul %18, %19, %cst_13 {dimension_numbers = #tpu.dot_dimension_numbers<[1], [0], [0], [1], [0, 0, 1, 1], [], []>} : vector<256x128xbf16>, vector<128x128xbf16>, vector<256x128xf32> -> vector<256x128xf32>
    %c2 = arith.constant 2 : index
    %c0_14 = arith.constant 0 : index
    %21 = vector.load %arg6[%c2, %c0_14] : memref<4x128xf32, #tpu.memory_space<vmem>>, vector<1x128xf32>
    %22 = vector.broadcast %21 : vector<1x128xf32> to vector<256x128xf32>
    %23 = arith.addf %20, %22 : vector<256x128xf32>
    %cst_15 = arith.constant 2.000000e-01 : f32
    %24 = vector.broadcast %cst_15 : f32 to vector<256x128xf32>
    %25 = arith.mulf %24, %23 : vector<256x128xf32>
    %26 = arith.maximumf %23, %25 : vector<256x128xf32>
    %27 = arith.truncf %26 : vector<256x128xf32> to vector<256x128xbf16>
    %c0_16 = arith.constant 0 : index
    %c0_17 = arith.constant 0 : index
    %28 = vector.load %arg5[%c0_16, %c0_17] : memref<128x128xbf16, #tpu.memory_space<vmem>>, vector<128x128xbf16>
    %cst_18 = arith.constant dense<0.000000e+00> : vector<256x128xf32>
    %29 = tpu.matmul %27, %28, %cst_18 {dimension_numbers = #tpu.dot_dimension_numbers<[1], [0], [0], [1], [0, 0, 1, 1], [], []>} : vector<256x128xbf16>, vector<128x128xbf16>, vector<256x128xf32> -> vector<256x128xf32>
    %c3 = arith.constant 3 : index
    %c0_19 = arith.constant 0 : index
    %30 = vector.load %arg6[%c3, %c0_19] : memref<4x128xf32, #tpu.memory_space<vmem>>, vector<1x128xf32>
    %31 = vector.broadcast %30 : vector<1x128xf32> to vector<256x128xf32>
    %32 = arith.addf %29, %31 : vector<256x128xf32>
    %33 = math.tanh %32 : vector<256x128xf32>
    %34 = arith.truncf %33 : vector<256x128xf32> to vector<256x128xbf16>
    %c0_20 = arith.constant 0 : index
    %c0_21 = arith.constant 0 : index
    %35 = vector.load %arg7[%c0_20, %c0_21] : memref<256x128xbf16, #tpu.memory_space<vmem>>, vector<256x128xbf16>
    tpu.vector_store %arg7[%c0_20, %c0_21], %34 {strides = array<i32>} : memref<256x128xbf16, #tpu.memory_space<vmem>>, vector<256x128xbf16>,
    return
  }
  func.func @transform_0(%arg0: i32) -> (i32, i32) {
    %c0_i32 = arith.constant 0 : i32
    %c0_i32_0 = arith.constant 0 : i32
    return %arg0, %c0_i32 : i32, i32
  }
  func.func @transform_1(%arg0: i32) -> (i32, i32) {
    %c0_i32 = arith.constant 0 : i32
    %c0_i32_0 = arith.constant 0 : i32
    %c0_i32_1 = arith.constant 0 : i32
    return %c0_i32, %c0_i32_0 : i32, i32
  }
  func.func @transform_2(%arg0: i32) -> (i32, i32) {
    %c0_i32 = arith.constant 0 : i32
    %c0_i32_0 = arith.constant 0 : i32
    %c0_i32_1 = arith.constant 0 : i32
    return %c0_i32, %c0_i32_0 : i32, i32
  }
  func.func @transform_3(%arg0: i32) -> (i32, i32) {
    %c0_i32 = arith.constant 0 : i32
    %c0_i32_0 = arith.constant 0 : i32
    %c0_i32_1 = arith.constant 0 : i32
    return %c0_i32, %c0_i32_0 : i32, i32
  }
  func.func @transform_4(%arg0: i32) -> (i32, i32) {
    %c0_i32 = arith.constant 0 : i32
    %c0_i32_0 = arith.constant 0 : i32
    %c0_i32_1 = arith.constant 0 : i32
    return %c0_i32, %c0_i32_0 : i32, i32
  }
  func.func @transform_5(%arg0: i32) -> (i32, i32) {
    %c0_i32 = arith.constant 0 : i32
    %c0_i32_0 = arith.constant 0 : i32
    %c0_i32_1 = arith.constant 0 : i32
    return %c0_i32, %c0_i32_0 : i32, i32
  }
  func.func @transform_6(%arg0: i32) -> (i32, i32) {
    %c0_i32 = arith.constant 0 : i32
    %c0_i32_0 = arith.constant 0 : i32
    return %arg0, %c0_i32 : i32, i32
  }
}

</mosaic_0001>

<llo_original>
// kernel: _forward_impl.1
$region0: #{_forward_impl.1}
  #allocation0 [shape = 'u32[]', space=smem, size = 0x4, offset = 0x4, fixed_abs, tag = 'smem constant byte address 0x4 - core index']
  #allocation1 [shape = 'u32[72,128]{1,0:T(1,128)}', space=vmem, size = 0x9000, scoped, tag = 'internal scratch']
  %s0 = inlined_call_operand.vmem [shape: bf16[256,128], index: 0, kind: input, shape index: {}]
  %s1 = inlined_call_operand.vmem [shape: bf16[128,128], index: 1, kind: input, shape index: {}]
  %s2 = inlined_call_operand.vmem [shape: bf16[128,128], index: 2, kind: input, shape index: {}]
  %s3 = inlined_call_operand.vmem [shape: bf16[128,128], index: 3, kind: input, shape index: {}]
  %s4 = inlined_call_operand.vmem [shape: bf16[128,128], index: 4, kind: input, shape index: {}]
  %s5 = inlined_call_operand.vmem [shape: f32[4,128], index: 5, kind: input, shape index: {}]
  %s6 = inlined_call_operand.vmem [shape: bf16[256,128], index: 6, kind: output, shape index: {}]
  %s7 = sld [smem:[#allocation0]]
  $region34: #{_forward_impl.1} parent=0
    _
  %s9 = ssub.s32 1, %s7
  %s10 = scalar_select 0, %s9, %s7
  // Predicated region
  $region2: #{_forward_impl.1} parent=0 // pred_check
    _
  $region3: #{_forward_impl.1} parent=0 // pred_check_branch
    %12 = sbr.rel (0) target = $region5
  $region4: #{_forward_impl.1} parent=0 // pred_region
    _
  $region5: #{_forward_impl.1} parent=0 // pred_fallthru
    _
  // Predicated region
  $region6: #{_forward_impl.1} parent=0 // pred_check
    _
  $region7: #{_forward_impl.1} parent=0 // pred_check_branch
    %14 = sbr.rel (0) target = $region9
  $region8: #{_forward_impl.1} parent=0 // pred_region
    _
  $region9: #{_forward_impl.1} parent=0 // pred_fallthru
    _
  // Predicated region
  $region10: #{_forward_impl.1} parent=0 // pred_check
    _
  $region11: #{_forward_impl.1} parent=0 // pred_check_branch
    %16 = sbr.rel (0) target = $region13
  $region12: #{_forward_impl.1} parent=0 // pred_region
    _
  $region13: #{_forward_impl.1} parent=0 // pred_fallthru
    _
  // Predicated region
  $region14: #{_forward_impl.1} parent=0 // pred_check
    _
  $region15: #{_forward_impl.1} parent=0 // pred_check_branch
    %18 = sbr.rel (0) target = $region17
  $region16: #{_forward_impl.1} parent=0 // pred_region
    _
  $region17: #{_forward_impl.1} parent=0 // pred_fallthru
    _
  // Predicated region
  $region18: #{_forward_impl.1} parent=0 // pred_check
    _
  $region19: #{_forward_impl.1} parent=0 // pred_check_branch
    %20 = sbr.rel (0) target = $region21
  $region20: #{_forward_impl.1} parent=0 // pred_region
    _
  $region21: #{_forward_impl.1} parent=0 // pred_fallthru
    _
  // Predicated region
  $region22: #{_forward_impl.1} parent=0 // pred_check
    _
  $region23: #{_forward_impl.1} parent=0 // pred_check_branch
    %22 = sbr.rel (0) target = $region25
  $region24: #{_forward_impl.1} parent=0 // pred_region
    _
  $region25: #{_forward_impl.1} parent=0 // pred_fallthru
    _
  %v23 = vld [vmem:[%s0] sm:$0xf]
  %v24 = vld [vmem:[%s0 + $0x4] sm:$0xf]
  %v25 = vld [vmem:[%s0 + $0x8] sm:$0xf]
  %v26 = vld [vmem:[%s0 + $0xc] sm:$0xf]
  %v27 = vld [vmem:[%s0 + $0x10] sm:$0xf]
  %v28 = vld [vmem:[%s0 + $0x14] sm:$0xf]
  %v29 = vld [vmem:[%s0 + $0x18] sm:$0xf]
  %v30 = vld [vmem:[%s0 + $0x1c] sm:$0xf]
  %v31 = vld [vmem:[%s0 + $0x20] sm:$0xf]
  %v32 = vld [vmem:[%s0 + $0x24] sm:$0xf]
  %v33 = vld [vmem:[%s0 + $0x28] sm:$0xf]
  %v34 = vld [vmem:[%s0 + $0x2c] sm:$0xf]
  %v35 = vld [vmem:[%s0 + $0x30] sm:$0xf]
  %v36 = vld [vmem:[%s0 + $0x34] sm:$0xf]
  %v37 = vld [vmem:[%s0 + $0x38] sm:$0xf]
  %v38 = vld [vmem:[%s0 + $0x3c] sm:$0xf]
  %v39 = vld [vmem:[%s0 + $0x40] sm:$0xf]
  %v40 = vld [vmem:[%s0 + $0x44] sm:$0xf]
  %v41 = vld [vmem:[%s0 + $0x48] sm:$0xf]
  %v42 = vld [vmem:[%s0 + $0x4c] sm:$0xf]
  %v43 = vld [vmem:[%s0 + $0x50] sm:$0xf]
  %v44 = vld [vmem:[%s0 + $0x54] sm:$0xf]
  %v45 = vld [vmem:[%s0 + $0x58] sm:$0xf]
  %v46 = vld [vmem:[%s0 + $0x5c] sm:$0xf]
  %v47 = vld [vmem:[%s0 + $0x60] sm:$0xf]
  %v48 = vld [vmem:[%s0 + $0x64] sm:$0xf]
  %v49 = vld [vmem:[%s0 + $0x68] sm:$0xf]
  %v50 = vld [vmem:[%s0 + $0x6c] sm:$0xf]
  %v51 = vld [vmem:[%s0 + $0x70] sm:$0xf]
  %v52 = vld [vmem:[%s0 + $0x74] sm:$0xf]
  %v53 = vld [vmem:[%s0 + $0x78] sm:$0xf]
  %v54 = vld [vmem:[%s0 + $0x7c] sm:$0xf]
  %v55 = vld [vmem:[%s1] sm:$0xf]
  %v56 = vld [vmem:[%s1 + $0x4] sm:$0xf]
  %v57 = vld [vmem:[%s1 + $0x8] sm:$0xf]
  %v58 = vld [vmem:[%s1 + $0xc] sm:$0xf]
  %v59 = vld [vmem:[%s1 + $0x10] sm:$0xf]
  %v60 = vld [vmem:[%s1 + $0x14] sm:$0xf]
  %v61 = vld [vmem:[%s1 + $0x18] sm:$0xf]
  %v62 = vld [vmem:[%s1 + $0x1c] sm:$0xf]
  %v63 = vld [vmem:[%s1 + $0x20] sm:$0xf]
  %v64 = vld [vmem:[%s1 + $0x24] sm:$0xf]
  %v65 = vld [vmem:[%s1 + $0x28] sm:$0xf]
  %v66 = vld [vmem:[%s1 + $0x2c] sm:$0xf]
  %v67 = vld [vmem:[%s1 + $0x30] sm:$0xf]
  %v68 = vld [vmem:[%s1 + $0x34] sm:$0xf]
  %v69 = vld [vmem:[%s1 + $0x38] sm:$0xf]
  %v70 = vld [vmem:[%s1 + $0x3c] sm:$0xf]
  %v71 = vld [vmem:[%s5] sm:$0x1]
  %v72 = vperm.slane %v71, 0
  %v105 = vunpack.c.l.b16 %v23
  %v106 = vunpack.c.l.b16 %v24
  %v107 = vunpack.c.l.b16 %v25
  %v108 = vunpack.c.l.b16 %v26
  %v109 = vunpack.c.l.b16 %v27
  %v110 = vunpack.c.l.b16 %v28
  %v111 = vunpack.c.l.b16 %v29
  %v112 = vunpack.c.l.b16 %v30
  %v113 = vunpack.c.l.b16 %v31
  %v114 = vunpack.c.l.b16 %v32
  %v115 = vunpack.c.l.b16 %v33
  %v116 = vunpack.c.l.b16 %v34
  %v117 = vunpack.c.l.b16 %v35
  %v118 = vunpack.c.l.b16 %v36
  %v119 = vunpack.c.l.b16 %v37
  %v120 = vunpack.c.l.b16 %v38
  %v121 = vunpack.c.l.b16 %v39
  %v122 = vunpack.c.l.b16 %v40
  %v123 = vunpack.c.l.b16 %v41
  %v124 = vunpack.c.l.b16 %v42
  %v125 = vunpack.c.l.b16 %v43
  %v126 = vunpack.c.l.b16 %v44
  %v127 = vunpack.c.l.b16 %v45
  %v128 = vunpack.c.l.b16 %v46
  %v129 = vunpack.c.l.b16 %v47
  %v130 = vunpack.c.l.b16 %v48
  %v131 = vunpack.c.l.b16 %v49
  %v132 = vunpack.c.l.b16 %v50
  %v133 = vunpack.c.l.b16 %v51
  %v134 = vunpack.c.l.b16 %v52
  %v135 = vunpack.c.l.b16 %v53
  %v136 = vunpack.c.l.b16 %v54
  %v137 = vpack.c.b16 %v106, %v105
  %v138 = vpack.c.b16 %v108, %v107
  %v139 = vpack.c.b16 %v110, %v109
  %v140 = vpack.c.b16 %v112, %v111
  %v141 = vpack.c.b16 %v114, %v113
  %v142 = vpack.c.b16 %v116, %v115
  %v143 = vpack.c.b16 %v118, %v117
  %v144 = vpack.c.b16 %v120, %v119
  %v145 = vpack.c.b16 %v122, %v121
  %v146 = vpack.c.b16 %v124, %v123
  %v147 = vpack.c.b16 %v126, %v125
  %v148 = vpack.c.b16 %v128, %v127
  %v149 = vpack.c.b16 %v130, %v129
  %v150 = vpack.c.b16 %v132, %v131
  %v151 = vpack.c.b16 %v134, %v133
  %v152 = vpack.c.b16 %v136, %v135
  %v185 = vunpack.c.l.b16 %v55
  %v186 = vunpack.c.l.b16 %v56
  %v187 = vunpack.c.l.b16 %v57
  %v188 = vunpack.c.l.b16 %v58
  %v189 = vunpack.c.l.b16 %v59
  %v190 = vunpack.c.l.b16 %v60
  %v191 = vunpack.c.l.b16 %v61
  %v192 = vunpack.c.l.b16 %v62
  %v193 = vunpack.c.l.b16 %v63
  %v194 = vunpack.c.l.b16 %v64
  %v195 = vunpack.c.l.b16 %v65
  %v196 = vunpack.c.l.b16 %v66
  %v197 = vunpack.c.l.b16 %v67
  %v198 = vunpack.c.l.b16 %v68
  %v199 = vunpack.c.l.b16 %v69
  %v200 = vunpack.c.l.b16 %v70
  %v201 = vpack.c.b16 %v186, %v185
  %v202 = vpack.c.b16 %v188, %v187
  %v203 = vpack.c.b16 %v190, %v189
  %v204 = vpack.c.b16 %v192, %v191
  %v205 = vpack.c.b16 %v194, %v193
  %v206 = vpack.c.b16 %v196, %v195
  %v207 = vpack.c.b16 %v198, %v197
  %v208 = vpack.c.b16 %v200, %v199
  %217 = vmatpush.bf16.msra.mxu0 %v208
  %218 = vmatpush.bf16.msra.mxu0 %v207
  %219 = vmatpush.bf16.msra.mxu0 %v206
  %220 = vmatpush.bf16.msra.mxu0 %v205
  %221 = vmatpush.bf16.msra.mxu0 %v204
  %222 = vmatpush.bf16.msra.mxu0 %v203
  %223 = vmatpush.bf16.msra.mxu0 %v202
  %224 = vmatpush.bf16.msra.mxu0 %v201
  %225 = vmatmul.bf16.gmra.mxu0 %v137
  %v226 = vpop.f32.mrf.mxu0
  %v227 = vadd.f32 %v72, %v226
  %v228 = vpop.f32.mrf.mxu0
  %v229 = vadd.f32 %v72, %v228
  %230 = vmatmul.bf16.gmra.mxu0 %v138
  %v231 = vpop.f32.mrf.mxu0
  %v232 = vadd.f32 %v72, %v231
  %v233 = vpop.f32.mrf.mxu0
  %v234 = vadd.f32 %v72, %v233
  %235 = vmatmul.bf16.gmra.mxu0 %v139
  %v236 = vpop.f32.mrf.mxu0
  %v237 = vadd.f32 %v72, %v236
  %v238 = vpop.f32.mrf.mxu0
  %v239 = vadd.f32 %v72, %v238
  %240 = vmatmul.bf16.gmra.mxu0 %v140
  %v241 = vpop.f32.mrf.mxu0
  %v242 = vadd.f32 %v72, %v241
  %v243 = vpop.f32.mrf.mxu0
  %v244 = vadd.f32 %v72, %v243
  %245 = vmatmul.bf16.gmra.mxu0 %v141
  %v246 = vpop.f32.mrf.mxu0
  %v247 = vadd.f32 %v72, %v246
  %v248 = vpop.f32.mrf.mxu0
  %v249 = vadd.f32 %v72, %v248
  %250 = vmatmul.bf16.gmra.mxu0 %v142
  %v251 = vpop.f32.mrf.mxu0
  %v252 = vadd.f32 %v72, %v251
  %v253 = vpop.f32.mrf.mxu0
  %v254 = vadd.f32 %v72, %v253
  %255 = vmatmul.bf16.gmra.mxu0 %v143
  %v256 = vpop.f32.mrf.mxu0
  %v257 = vadd.f32 %v72, %v256
  %v258 = vpop.f32.mrf.mxu0
  %v259 = vadd.f32 %v72, %v258
  %260 = vmatmul.bf16.gmra.mxu0 %v144
  %v261 = vpop.f32.mrf.mxu0
  %v262 = vadd.f32 %v72, %v261
  %v263 = vpop.f32.mrf.mxu0
  %v264 = vadd.f32 %v72, %v263
  %265 = vmatmul.bf16.gmra.mxu0 %v145
  %v266 = vpop.f32.mrf.mxu0
  %v267 = vadd.f32 %v72, %v266
  %v268 = vpop.f32.mrf.mxu0
  %v269 = vadd.f32 %v72, %v268
  %270 = vmatmul.bf16.gmra.mxu0 %v146
  %v271 = vpop.f32.mrf.mxu0
  %v272 = vadd.f32 %v72, %v271
  %v273 = vpop.f32.mrf.mxu0
  %v274 = vadd.f32 %v72, %v273
  %275 = vmatmul.bf16.gmra.mxu0 %v147
  %v276 = vpop.f32.mrf.mxu0
  %v277 = vadd.f32 %v72, %v276
  %v278 = vpop.f32.mrf.mxu0
  %v279 = vadd.f32 %v72, %v278
  %280 = vmatmul.bf16.gmra.mxu0 %v148
  %v281 = vpop.f32.mrf.mxu0
  %v282 = vadd.f32 %v72, %v281
  %v283 = vpop.f32.mrf.mxu0
  %v284 = vadd.f32 %v72, %v283
  %285 = vmatmul.bf16.gmra.mxu0 %v149
  %v286 = vpop.f32.mrf.mxu0
  %v287 = vadd.f32 %v72, %v286
  %v288 = vpop.f32.mrf.mxu0
  %v289 = vadd.f32 %v72, %v288
  %290 = vmatmul.bf16.gmra.mxu0 %v150
  %v291 = vpop.f32.mrf.mxu0
  %v292 = vadd.f32 %v72, %v291
  %v293 = vpop.f32.mrf.mxu0
  %v294 = vadd.f32 %v72, %v293
  %295 = vmatmul.bf16.gmra.mxu0 %v151
  %v296 = vpop.f32.mrf.mxu0
  %v297 = vadd.f32 %v72, %v296
  %v298 = vpop.f32.mrf.mxu0
  %v299 = vadd.f32 %v72, %v298
  %300 = vmatmul.bf16.gmra.mxu0 %v152
  %v301 = vpop.f32.mrf.mxu0
  %v302 = vadd.f32 %v72, %v301
  %v303 = vpop.f32.mrf.mxu0
  %v304 = vadd.f32 %v72, %v303
  %305 = vdwg.mxu0
  %v306 = vmul.f32 %v227, 0.2
  %v307 = vmul.f32 %v229, 0.2
  %v308 = vmul.f32 %v232, 0.2
  %v309 = vmul.f32 %v234, 0.2
  %v310 = vmul.f32 %v237, 0.2
  %v311 = vmul.f32 %v239, 0.2
  %v312 = vmul.f32 %v242, 0.2
  %v313 = vmul.f32 %v244, 0.2
  %v314 = vmul.f32 %v247, 0.2
  %v315 = vmul.f32 %v249, 0.2
  %v316 = vmul.f32 %v252, 0.2
  %v317 = vmul.f32 %v254, 0.2
  %v318 = vmul.f32 %v257, 0.2
  %v319 = vmul.f32 %v259, 0.2
  %v320 = vmul.f32 %v262, 0.2
  %v321 = vmul.f32 %v264, 0.2
  %v322 = vmul.f32 %v267, 0.2
  %v323 = vmul.f32 %v269, 0.2
  %v324 = vmul.f32 %v272, 0.2
  %v325 = vmul.f32 %v274, 0.2
  %v326 = vmul.f32 %v277, 0.2
  %v327 = vmul.f32 %v279, 0.2
  %v328 = vmul.f32 %v282, 0.2
  %v329 = vmul.f32 %v284, 0.2
  %v330 = vmul.f32 %v287, 0.2
  %v331 = vmul.f32 %v289, 0.2
  %v332 = vmul.f32 %v292, 0.2
  %v333 = vmul.f32 %v294, 0.2
  %v334 = vmul.f32 %v297, 0.2
  %v335 = vmul.f32 %v299, 0.2
  %v336 = vmul.f32 %v302, 0.2
  %v337 = vmul.f32 %v304, 0.2
  %v338 = vmax.f32 %v227, %v306
  %v339 = vmax.f32 %v229, %v307
  %v340 = vmax.f32 %v232, %v308
  %v341 = vmax.f32 %v234, %v309
  %v342 = vmax.f32 %v237, %v310
  %v343 = vmax.f32 %v239, %v311
  %v344 = vmax.f32 %v242, %v312
  %v345 = vmax.f32 %v244, %v313
  %v346 = vmax.f32 %v247, %v314
  %v347 = vmax.f32 %v249, %v315
  %v348 = vmax.f32 %v252, %v316
  %v349 = vmax.f32 %v254, %v317
  %v350 = vmax.f32 %v257, %v318
  %v351 = vmax.f32 %v259, %v319
  %v352 = vmax.f32 %v262, %v320
  %v353 = vmax.f32 %v264, %v321
  %v354 = vmax.f32 %v267, %v322
  %v355 = vmax.f32 %v269, %v323
  %v356 = vmax.f32 %v272, %v324
  %v357 = vmax.f32 %v274, %v325
  %v358 = vmax.f32 %v277, %v326
  %v359 = vmax.f32 %v279, %v327
  %v360 = vmax.f32 %v282, %v328
  %v361 = vmax.f32 %v284, %v329
  %v362 = vmax.f32 %v287, %v330
  %v363 = vmax.f32 %v289, %v331
  %v364 = vmax.f32 %v292, %v332
  %v365 = vmax.f32 %v294, %v333
  %v366 = vmax.f32 %v297, %v334
  %v367 = vmax.f32 %v299, %v335
  %v368 = vmax.f32 %v302, %v336
  %v369 = vmax.f32 %v304, %v337
  %v370 = vpack.c.bf16 %v339, %v338
  %v371 = vpack.c.bf16 %v341, %v340
  %v372 = vpack.c.bf16 %v343, %v342
  %v373 = vpack.c.bf16 %v345, %v344
  %v374 = vpack.c.bf16 %v347, %v346
  %v375 = vpack.c.bf16 %v349, %v348
  %v376 = vpack.c.bf16 %v351, %v350
  %v377 = vpack.c.bf16 %v353, %v352
  %v378 = vpack.c.bf16 %v355, %v354
  %v379 = vpack.c.bf16 %v357, %v356
  %v380 = vpack.c.bf16 %v359, %v358
  %v381 = vpack.c.bf16 %v361, %v360
  %v382 = vpack.c.bf16 %v363, %v362
  %v383 = vpack.c.bf16 %v365, %v364
  %v384 = vpack.c.bf16 %v367, %v366
  %v385 = vpack.c.bf16 %v369, %v368
  %v386 = vld [vmem:[%s2] sm:$0xf]
  %v387 = vld [vmem:[%s2 + $0x4] sm:$0xf]
  %v388 = vld [vmem:[%s2 + $0x8] sm:$0xf]
  %v389 = vld [vmem:[%s2 + $0xc] sm:$0xf]
  %v390 = vld [vmem:[%s2 + $0x10] sm:$0xf]
  %v391 = vld [vmem:[%s2 + $0x14] sm:$0xf]
  %v392 = vld [vmem:[%s2 + $0x18] sm:$0xf]
  %v393 = vld [vmem:[%s2 + $0x1c] sm:$0xf]
  %v394 = vld [vmem:[%s2 + $0x20] sm:$0xf]
  %v395 = vld [vmem:[%s2 + $0x24] sm:$0xf]
  %v396 = vld [vmem:[%s2 + $0x28] sm:$0xf]
  %v397 = vld [vmem:[%s2 + $0x2c] sm:$0xf]
  %v398 = vld [vmem:[%s2 + $0x30] sm:$0xf]
  %v399 = vld [vmem:[%s2 + $0x34] sm:$0xf]
  %v400 = vld [vmem:[%s2 + $0x38] sm:$0xf]
  %v401 = vld [vmem:[%s2 + $0x3c] sm:$0xf]
  %v402 = vld [vmem:[%s5 + $0x1] sm:$0x1]
  %v403 = vperm.slane %v402, 0
  %v420 = vunpack.c.l.b16 %v386
  %v421 = vunpack.c.l.b16 %v387
  %v422 = vunpack.c.l.b16 %v388
  %v423 = vunpack.c.l.b16 %v389
  %v424 = vunpack.c.l.b16 %v390
  %v425 = vunpack.c.l.b16 %v391
  %v426 = vunpack.c.l.b16 %v392
  %v427 = vunpack.c.l.b16 %v393
  %v428 = vunpack.c.l.b16 %v394
  %v429 = vunpack.c.l.b16 %v395
  %v430 = vunpack.c.l.b16 %v396
  %v431 = vunpack.c.l.b16 %v397
  %v432 = vunpack.c.l.b16 %v398
  %v433 = vunpack.c.l.b16 %v399
  %v434 = vunpack.c.l.b16 %v400
  %v435 = vunpack.c.l.b16 %v401
  %v436 = vpack.c.b16 %v421, %v420
  %v437 = vpack.c.b16 %v423, %v422
  %v438 = vpack.c.b16 %v425, %v424
  %v439 = vpack.c.b16 %v427, %v426
  %v440 = vpack.c.b16 %v429, %v428
  %v441 = vpack.c.b16 %v431, %v430
  %v442 = vpack.c.b16 %v433, %v432
  %v443 = vpack.c.b16 %v435, %v434
  %452 = vmatpush.bf16.msra.mxu0 %v443
  %453 = vmatpush.bf16.msra.mxu0 %v442
  %454 = vmatpush.bf16.msra.mxu0 %v441
  %455 = vmatpush.bf16.msra.mxu0 %v440
  %456 = vmatpush.bf16.msra.mxu0 %v439
  %457 = vmatpush.bf16.msra.mxu0 %v438
  %458 = vmatpush.bf16.msra.mxu0 %v437
  %459 = vmatpush.bf16.msra.mxu0 %v436
  %460 = vmatmul.bf16.gmra.mxu0 %v370
  %v461 = vpop.f32.mrf.mxu0
  %v462 = vadd.f32 %v403, %v461
  %v463 = vpop.f32.mrf.mxu0
  %v464 = vadd.f32 %v403, %v463
  %465 = vmatmul.bf16.gmra.mxu0 %v371
  %v466 = vpop.f32.mrf.mxu0
  %v467 = vadd.f32 %v403, %v466
  %v468 = vpop.f32.mrf.mxu0
  %v469 = vadd.f32 %v403, %v468
  %470 = vmatmul.bf16.gmra.mxu0 %v372
  %v471 = vpop.f32.mrf.mxu0
  %v472 = vadd.f32 %v403, %v471
  %v473 = vpop.f32.mrf.mxu0
  %v474 = vadd.f32 %v403, %v473
  %475 = vmatmul.bf16.gmra.mxu0 %v373
  %v476 = vpop.f32.mrf.mxu0
  %v477 = vadd.f32 %v403, %v476
  %v478 = vpop.f32.mrf.mxu0
  %v479 = vadd.f32 %v403, %v478
  %480 = vmatmul.bf16.gmra.mxu0 %v374
  %v481 = vpop.f32.mrf.mxu0
  %v482 = vadd.f32 %v403, %v481
  %v483 = vpop.f32.mrf.mxu0
  %v484 = vadd.f32 %v403, %v483
  %485 = vmatmul.bf16.gmra.mxu0 %v375
  %v486 = vpop.f32.mrf.mxu0
  %v487 = vadd.f32 %v403, %v486
  %v488 = vpop.f32.mrf.mxu0
  %v489 = vadd.f32 %v403, %v488
  %490 = vmatmul.bf16.gmra.mxu0 %v376
  %v491 = vpop.f32.mrf.mxu0
  %v492 = vadd.f32 %v403, %v491
  %v493 = vpop.f32.mrf.mxu0
  %v494 = vadd.f32 %v403, %v493
  %495 = vmatmul.bf16.gmra.mxu0 %v377
  %v496 = vpop.f32.mrf.mxu0
  %v497 = vadd.f32 %v403, %v496
  %v498 = vpop.f32.mrf.mxu0
  %v499 = vadd.f32 %v403, %v498
  %500 = vmatmul.bf16.gmra.mxu0 %v378
  %v501 = vpop.f32.mrf.mxu0
  %v502 = vadd.f32 %v403, %v501
  %v503 = vpop.f32.mrf.mxu0
  %v504 = vadd.f32 %v403, %v503
  %505 = vmatmul.bf16.gmra.mxu0 %v379
  %v506 = vpop.f32.mrf.mxu0
  %v507 = vadd.f32 %v403, %v506
  %v508 = vpop.f32.mrf.mxu0
  %v509 = vadd.f32 %v403, %v508
  %510 = vmatmul.bf16.gmra.mxu0 %v380
  %v511 = vpop.f32.mrf.mxu0
  %v512 = vadd.f32 %v403, %v511
  %v513 = vpop.f32.mrf.mxu0
  %v514 = vadd.f32 %v403, %v513
  %515 = vmatmul.bf16.gmra.mxu0 %v381
  %v516 = vpop.f32.mrf.mxu0
  %v517 = vadd.f32 %v403, %v516
  %v518 = vpop.f32.mrf.mxu0
  %v519 = vadd.f32 %v403, %v518
  %520 = vmatmul.bf16.gmra.mxu0 %v382
  %v521 = vpop.f32.mrf.mxu0
  %v522 = vadd.f32 %v403, %v521
  %v523 = vpop.f32.mrf.mxu0
  %v524 = vadd.f32 %v403, %v523
  %525 = vmatmul.bf16.gmra.mxu0 %v383
  %v526 = vpop.f32.mrf.mxu0
  %v527 = vadd.f32 %v403, %v526
  %v528 = vpop.f32.mrf.mxu0
  %v529 = vadd.f32 %v403, %v528
  %530 = vmatmul.bf16.gmra.mxu0 %v384
  %v531 = vpop.f32.mrf.mxu0
  %v532 = vadd.f32 %v403, %v531
  %v533 = vpop.f32.mrf.mxu0
  %v534 = vadd.f32 %v403, %v533
  %535 = vmatmul.bf16.gmra.mxu0 %v385
  %v536 = vpop.f32.mrf.mxu0
  %v537 = vadd.f32 %v403, %v536
  %v538 = vpop.f32.mrf.mxu0
  %v539 = vadd.f32 %v403, %v538
  %540 = vdwg.mxu0
  %v541 = vmul.f32 %v462, 0.2
  %v542 = vmul.f32 %v464, 0.2
  %v543 = vmul.f32 %v467, 0.2
  %v544 = vmul.f32 %v469, 0.2
  %v545 = vmul.f32 %v472, 0.2
  %v546 = vmul.f32 %v474, 0.2
  %v547 = vmul.f32 %v477, 0.2
  %v548 = vmul.f32 %v479, 0.2
  %v549 = vmul.f32 %v482, 0.2
  %v550 = vmul.f32 %v484, 0.2
  %v551 = vmul.f32 %v487, 0.2
  %v552 = vmul.f32 %v489, 0.2
  %v553 = vmul.f32 %v492, 0.2
  %v554 = vmul.f32 %v494, 0.2
  %v555 = vmul.f32 %v497, 0.2
  %v556 = vmul.f32 %v499, 0.2
  %v557 = vmul.f32 %v502, 0.2
  %v558 = vmul.f32 %v504, 0.2
  %v559 = vmul.f32 %v507, 0.2
  %v560 = vmul.f32 %v509, 0.2
  %v561 = vmul.f32 %v512, 0.2
  %v562 = vmul.f32 %v514, 0.2
  %v563 = vmul.f32 %v517, 0.2
  %v564 = vmul.f32 %v519, 0.2
  %v565 = vmul.f32 %v522, 0.2
  %v566 = vmul.f32 %v524, 0.2
  %v567 = vmul.f32 %v527, 0.2
  %v568 = vmul.f32 %v529, 0.2
  %v569 = vmul.f32 %v532, 0.2
  %v570 = vmul.f32 %v534, 0.2
  %v571 = vmul.f32 %v537, 0.2
  %v572 = vmul.f32 %v539, 0.2
  %v573 = vmax.f32 %v462, %v541
  %v574 = vmax.f32 %v464, %v542
  %v575 = vmax.f32 %v467, %v543
  %v576 = vmax.f32 %v469, %v544
  %v577 = vmax.f32 %v472, %v545
  %v578 = vmax.f32 %v474, %v546
  %v579 = vmax.f32 %v477, %v547
  %v580 = vmax.f32 %v479, %v548
  %v581 = vmax.f32 %v482, %v549
  %v582 = vmax.f32 %v484, %v550
  %v583 = vmax.f32 %v487, %v551
  %v584 = vmax.f32 %v489, %v552
  %v585 = vmax.f32 %v492, %v553
  %v586 = vmax.f32 %v494, %v554
  %v587 = vmax.f32 %v497, %v555
  %v588 = vmax.f32 %v499, %v556
  %v589 = vmax.f32 %v502, %v557
  %v590 = vmax.f32 %v504, %v558
  %v591 = vmax.f32 %v507, %v559
  %v592 = vmax.f32 %v509, %v560
  %v593 = vmax.f32 %v512, %v561
  %v594 = vmax.f32 %v514, %v562
  %v595 = vmax.f32 %v517, %v563
  %v596 = vmax.f32 %v519, %v564
  %v597 = vmax.f32 %v522, %v565
  %v598 = vmax.f32 %v524, %v566
  %v599 = vmax.f32 %v527, %v567
  %v600 = vmax.f32 %v529, %v568
  %v601 = vmax.f32 %v532, %v569
  %v602 = vmax.f32 %v534, %v570
  %v603 = vmax.f32 %v537, %v571
  %v604 = vmax.f32 %v539, %v572
  %v605 = vpack.c.bf16 %v574, %v573
  %v606 = vpack.c.bf16 %v576, %v575
  %v607 = vpack.c.bf16 %v578, %v577
  %v608 = vpack.c.bf16 %v580, %v579
  %v609 = vpack.c.bf16 %v582, %v581
  %v610 = vpack.c.bf16 %v584, %v583
  %v611 = vpack.c.bf16 %v586, %v585
  %v612 = vpack.c.bf16 %v588, %v587
  %v613 = vpack.c.bf16 %v590, %v589
  %v614 = vpack.c.bf16 %v592, %v591
  %v615 = vpack.c.bf16 %v594, %v593
  %v616 = vpack.c.bf16 %v596, %v595
  %v617 = vpack.c.bf16 %v598, %v597
  %v618 = vpack.c.bf16 %v600, %v599
  %v619 = vpack.c.bf16 %v602, %v601
  %v620 = vpack.c.bf16 %v604, %v603
  %v621 = vld [vmem:[%s3] sm:$0xf]
  %v622 = vld [vmem:[%s3 + $0x4] sm:$0xf]
  %v623 = vld [vmem:[%s3 + $0x8] sm:$0xf]
  %v624 = vld [vmem:[%s3 + $0xc] sm:$0xf]
  %v625 = vld [vmem:[%s3 + $0x10] sm:$0xf]
  %v626 = vld [vmem:[%s3 + $0x14] sm:$0xf]
  %v627 = vld [vmem:[%s3 + $0x18] sm:$0xf]
  %v628 = vld [vmem:[%s3 + $0x1c] sm:$0xf]
  %v629 = vld [vmem:[%s3 + $0x20] sm:$0xf]
  %v630 = vld [vmem:[%s3 + $0x24] sm:$0xf]
  %v631 = vld [vmem:[%s3 + $0x28] sm:$0xf]
  %v632 = vld [vmem:[%s3 + $0x2c] sm:$0xf]
  %v633 = vld [vmem:[%s3 + $0x30] sm:$0xf]
  %v634 = vld [vmem:[%s3 + $0x34] sm:$0xf]
  %v635 = vld [vmem:[%s3 + $0x38] sm:$0xf]
  %v636 = vld [vmem:[%s3 + $0x3c] sm:$0xf]
  %v637 = vld [vmem:[%s5 + $0x2] sm:$0x1]
  %v638 = vperm.slane %v637, 0
  %v655 = vunpack.c.l.b16 %v621
  %v656 = vunpack.c.l.b16 %v622
  %v657 = vunpack.c.l.b16 %v623
  %v658 = vunpack.c.l.b16 %v624
  %v659 = vunpack.c.l.b16 %v625
  %v660 = vunpack.c.l.b16 %v626
  %v661 = vunpack.c.l.b16 %v627
  %v662 = vunpack.c.l.b16 %v628
  %v663 = vunpack.c.l.b16 %v629
  %v664 = vunpack.c.l.b16 %v630
  %v665 = vunpack.c.l.b16 %v631
  %v666 = vunpack.c.l.b16 %v632
  %v667 = vunpack.c.l.b16 %v633
  %v668 = vunpack.c.l.b16 %v634
  %v669 = vunpack.c.l.b16 %v635
  %v670 = vunpack.c.l.b16 %v636
  %v671 = vpack.c.b16 %v656, %v655
  %v672 = vpack.c.b16 %v658, %v657
  %v673 = vpack.c.b16 %v660, %v659
  %v674 = vpack.c.b16 %v662, %v661
  %v675 = vpack.c.b16 %v664, %v663
  %v676 = vpack.c.b16 %v666, %v665
  %v677 = vpack.c.b16 %v668, %v667
  %v678 = vpack.c.b16 %v670, %v669
  %687 = vmatpush.bf16.msra.mxu0 %v678
  %688 = vmatpush.bf16.msra.mxu0 %v677
  %689 = vmatpush.bf16.msra.mxu0 %v676
  %690 = vmatpush.bf16.msra.mxu0 %v675
  %691 = vmatpush.bf16.msra.mxu0 %v674
  %692 = vmatpush.bf16.msra.mxu0 %v673
  %693 = vmatpush.bf16.msra.mxu0 %v672
  %694 = vmatpush.bf16.msra.mxu0 %v671
  %695 = vmatmul.bf16.gmra.mxu0 %v605
  %v696 = vpop.f32.mrf.mxu0
  %v697 = vadd.f32 %v638, %v696
  %v698 = vpop.f32.mrf.mxu0
  %v699 = vadd.f32 %v638, %v698
  %700 = vmatmul.bf16.gmra.mxu0 %v606
  %v701 = vpop.f32.mrf.mxu0
  %v702 = vadd.f32 %v638, %v701
  %v703 = vpop.f32.mrf.mxu0
  %v704 = vadd.f32 %v638, %v703
  %705 = vmatmul.bf16.gmra.mxu0 %v607
  %v706 = vpop.f32.mrf.mxu0
  %v707 = vadd.f32 %v638, %v706
  %v708 = vpop.f32.mrf.mxu0
  %v709 = vadd.f32 %v638, %v708
  %710 = vmatmul.bf16.gmra.mxu0 %v608
  %v711 = vpop.f32.mrf.mxu0
  %v712 = vadd.f32 %v638, %v711
  %v713 = vpop.f32.mrf.mxu0
  %v714 = vadd.f32 %v638, %v713
  %715 = vmatmul.bf16.gmra.mxu0 %v609
  %v716 = vpop.f32.mrf.mxu0
  %v717 = vadd.f32 %v638, %v716
  %v718 = vpop.f32.mrf.mxu0
  %v719 = vadd.f32 %v638, %v718
  %720 = vmatmul.bf16.gmra.mxu0 %v610
  %v721 = vpop.f32.mrf.mxu0
  %v722 = vadd.f32 %v638, %v721
  %v723 = vpop.f32.mrf.mxu0
  %v724 = vadd.f32 %v638, %v723
  %725 = vmatmul.bf16.gmra.mxu0 %v611
  %v726 = vpop.f32.mrf.mxu0
  %v727 = vadd.f32 %v638, %v726
  %v728 = vpop.f32.mrf.mxu0
  %v729 = vadd.f32 %v638, %v728
  %730 = vmatmul.bf16.gmra.mxu0 %v612
  %v731 = vpop.f32.mrf.mxu0
  %v732 = vadd.f32 %v638, %v731
  %v733 = vpop.f32.mrf.mxu0
  %v734 = vadd.f32 %v638, %v733
  %735 = vmatmul.bf16.gmra.mxu0 %v613
  %v736 = vpop.f32.mrf.mxu0
  %v737 = vadd.f32 %v638, %v736
  %v738 = vpop.f32.mrf.mxu0
  %v739 = vadd.f32 %v638, %v738
  %740 = vmatmul.bf16.gmra.mxu0 %v614
  %v741 = vpop.f32.mrf.mxu0
  %v742 = vadd.f32 %v638, %v741
  %v743 = vpop.f32.mrf.mxu0
  %v744 = vadd.f32 %v638, %v743
  %745 = vmatmul.bf16.gmra.mxu0 %v615
  %v746 = vpop.f32.mrf.mxu0
  %v747 = vadd.f32 %v638, %v746
  %v748 = vpop.f32.mrf.mxu0
  %v749 = vadd.f32 %v638, %v748
  %750 = vmatmul.bf16.gmra.mxu0 %v616
  %v751 = vpop.f32.mrf.mxu0
  %v752 = vadd.f32 %v638, %v751
  %v753 = vpop.f32.mrf.mxu0
  %v754 = vadd.f32 %v638, %v753
  %755 = vmatmul.bf16.gmra.mxu0 %v617
  %v756 = vpop.f32.mrf.mxu0
  %v757 = vadd.f32 %v638, %v756
  %v758 = vpop.f32.mrf.mxu0
  %v759 = vadd.f32 %v638, %v758
  %760 = vmatmul.bf16.gmra.mxu0 %v618
  %v761 = vpop.f32.mrf.mxu0
  %v762 = vadd.f32 %v638, %v761
  %v763 = vpop.f32.mrf.mxu0
  %v764 = vadd.f32 %v638, %v763
  %765 = vmatmul.bf16.gmra.mxu0 %v619
  %v766 = vpop.f32.mrf.mxu0
  %v767 = vadd.f32 %v638, %v766
  %v768 = vpop.f32.mrf.mxu0
  %v769 = vadd.f32 %v638, %v768
  %770 = vmatmul.bf16.gmra.mxu0 %v620
  %v771 = vpop.f32.mrf.mxu0
  %v772 = vadd.f32 %v638, %v771
  %v773 = vpop.f32.mrf.mxu0
  %v774 = vadd.f32 %v638, %v773
  %775 = vdwg.mxu0
  %v776 = vmul.f32 %v697, 0.2
  %v777 = vmul.f32 %v699, 0.2
  %v778 = vmul.f32 %v702, 0.2
  %v779 = vmul.f32 %v704, 0.2
  %v780 = vmul.f32 %v707, 0.2
  %v781 = vmul.f32 %v709, 0.2
  %v782 = vmul.f32 %v712, 0.2
  %v783 = vmul.f32 %v714, 0.2
  %v784 = vmul.f32 %v717, 0.2
  %v785 = vmul.f32 %v719, 0.2
  %v786 = vmul.f32 %v722, 0.2
  %v787 = vmul.f32 %v724, 0.2
  %v788 = vmul.f32 %v727, 0.2
  %v789 = vmul.f32 %v729, 0.2
  %v790 = vmul.f32 %v732, 0.2
  %v791 = vmul.f32 %v734, 0.2
  %v792 = vmul.f32 %v737, 0.2
  %v793 = vmul.f32 %v739, 0.2
  %v794 = vmul.f32 %v742, 0.2
  %v795 = vmul.f32 %v744, 0.2
  %v796 = vmul.f32 %v747, 0.2
  %v797 = vmul.f32 %v749, 0.2
  %v798 = vmul.f32 %v752, 0.2
  %v799 = vmul.f32 %v754, 0.2
  %v800 = vmul.f32 %v757, 0.2
  %v801 = vmul.f32 %v759, 0.2
  %v802 = vmul.f32 %v762, 0.2
  %v803 = vmul.f32 %v764, 0.2
  %v804 = vmul.f32 %v767, 0.2
  %v805 = vmul.f32 %v769, 0.2
  %v806 = vmul.f32 %v772, 0.2
  %v807 = vmul.f32 %v774, 0.2
  %v808 = vmax.f32 %v697, %v776
  %v809 = vmax.f32 %v699, %v777
  %v810 = vmax.f32 %v702, %v778
  %v811 = vmax.f32 %v704, %v779
  %v812 = vmax.f32 %v707, %v780
  %v813 = vmax.f32 %v709, %v781
  %v814 = vmax.f32 %v712, %v782
  %v815 = vmax.f32 %v714, %v783
  %v816 = vmax.f32 %v717, %v784
  %v817 = vmax.f32 %v719, %v785
  %v818 = vmax.f32 %v722, %v786
  %v819 = vmax.f32 %v724, %v787
  %v820 = vmax.f32 %v727, %v788
  %v821 = vmax.f32 %v729, %v789
  %v822 = vmax.f32 %v732, %v790
  %v823 = vmax.f32 %v734, %v791
  %v824 = vmax.f32 %v737, %v792
  %v825 = vmax.f32 %v739, %v793
  %v826 = vmax.f32 %v742, %v794
  %v827 = vmax.f32 %v744, %v795
  %v828 = vmax.f32 %v747, %v796
  %v829 = vmax.f32 %v749, %v797
  %v830 = vmax.f32 %v752, %v798
  %v831 = vmax.f32 %v754, %v799
  %v832 = vmax.f32 %v757, %v800
  %v833 = vmax.f32 %v759, %v801
  %v834 = vmax.f32 %v762, %v802
  %v835 = vmax.f32 %v764, %v803
  %v836 = vmax.f32 %v767, %v804
  %v837 = vmax.f32 %v769, %v805
  %v838 = vmax.f32 %v772, %v806
  %v839 = vmax.f32 %v774, %v807
  %v840 = vpack.c.bf16 %v809, %v808
  %v841 = vpack.c.bf16 %v811, %v810
  %v842 = vpack.c.bf16 %v813, %v812
  %v843 = vpack.c.bf16 %v815, %v814
  %v844 = vpack.c.bf16 %v817, %v816
  %v845 = vpack.c.bf16 %v819, %v818
  %v846 = vpack.c.bf16 %v821, %v820
  %v847 = vpack.c.bf16 %v823, %v822
  %v848 = vpack.c.bf16 %v825, %v824
  %v849 = vpack.c.bf16 %v827, %v826
  %v850 = vpack.c.bf16 %v829, %v828
  %v851 = vpack.c.bf16 %v831, %v830
  %v852 = vpack.c.bf16 %v833, %v832
  %v853 = vpack.c.bf16 %v835, %v834
  %v854 = vpack.c.bf16 %v837, %v836
  %v855 = vpack.c.bf16 %v839, %v838
  %v856 = vld [vmem:[%s4] sm:$0xf]
  %v857 = vld [vmem:[%s4 + $0x4] sm:$0xf]
  %v858 = vld [vmem:[%s4 + $0x8] sm:$0xf]
  %v859 = vld [vmem:[%s4 + $0xc] sm:$0xf]
  %v860 = vld [vmem:[%s4 + $0x10] sm:$0xf]
  %v861 = vld [vmem:[%s4 + $0x14] sm:$0xf]
  %v862 = vld [vmem:[%s4 + $0x18] sm:$0xf]
  %v863 = vld [vmem:[%s4 + $0x1c] sm:$0xf]
  %v864 = vld [vmem:[%s4 + $0x20] sm:$0xf]
  %v865 = vld [vmem:[%s4 + $0x24] sm:$0xf]
  %v866 = vld [vmem:[%s4 + $0x28] sm:$0xf]
  %v867 = vld [vmem:[%s4 + $0x2c] sm:$0xf]
  %v868 = vld [vmem:[%s4 + $0x30] sm:$0xf]
  %v869 = vld [vmem:[%s4 + $0x34] sm:$0xf]
  %v870 = vld [vmem:[%s4 + $0x38] sm:$0xf]
  %v871 = vld [vmem:[%s4 + $0x3c] sm:$0xf]
  %v872 = vld [vmem:[%s5 + $0x3] sm:$0x1]
  %v873 = vperm.slane %v872, 0
  %v890 = vunpack.c.l.b16 %v856
  %v891 = vunpack.c.l.b16 %v857
  %v892 = vunpack.c.l.b16 %v858
  %v893 = vunpack.c.l.b16 %v859
  %v894 = vunpack.c.l.b16 %v860
  %v895 = vunpack.c.l.b16 %v861
  %v896 = vunpack.c.l.b16 %v862
  %v897 = vunpack.c.l.b16 %v863
  %v898 = vunpack.c.l.b16 %v864
  %v899 = vunpack.c.l.b16 %v865
  %v900 = vunpack.c.l.b16 %v866
  %v901 = vunpack.c.l.b16 %v867
  %v902 = vunpack.c.l.b16 %v868
  %v903 = vunpack.c.l.b16 %v869
  %v904 = vunpack.c.l.b16 %v870
  %v905 = vunpack.c.l.b16 %v871
  %v906 = vpack.c.b16 %v891, %v890
  %v907 = vpack.c.b16 %v893, %v892
  %v908 = vpack.c.b16 %v895, %v894
  %v909 = vpack.c.b16 %v897, %v896
  %v910 = vpack.c.b16 %v899, %v898
  %v911 = vpack.c.b16 %v901, %v900
  %v912 = vpack.c.b16 %v903, %v902
  %v913 = vpack.c.b16 %v905, %v904
  %922 = vmatpush.bf16.msra.mxu0 %v913
  %923 = vmatpush.bf16.msra.mxu0 %v912
  %924 = vmatpush.bf16.msra.mxu0 %v911
  %925 = vmatpush.bf16.msra.mxu0 %v910
  %926 = vmatpush.bf16.msra.mxu0 %v909
  %927 = vmatpush.bf16.msra.mxu0 %v908
  %928 = vmatpush.bf16.msra.mxu0 %v907
  %929 = vmatpush.bf16.msra.mxu0 %v906
  %930 = vmatmul.bf16.gmra.mxu0 %v840
  %v931 = vpop.f32.mrf.mxu0
  %v932 = vadd.f32 %v873, %v931
  %v933 = vpop.f32.mrf.mxu0
  %v934 = vadd.f32 %v873, %v933
  %935 = vmatmul.bf16.gmra.mxu0 %v841
  %v936 = vpop.f32.mrf.mxu0
  %v937 = vadd.f32 %v873, %v936
  %v938 = vpop.f32.mrf.mxu0
  %v939 = vadd.f32 %v873, %v938
  %940 = vmatmul.bf16.gmra.mxu0 %v842
  %v941 = vpop.f32.mrf.mxu0
  %v942 = vadd.f32 %v873, %v941
  %v943 = vpop.f32.mrf.mxu0
  %v944 = vadd.f32 %v873, %v943
  %945 = vmatmul.bf16.gmra.mxu0 %v843
  %v946 = vpop.f32.mrf.mxu0
  %v947 = vadd.f32 %v873, %v946
  %v948 = vpop.f32.mrf.mxu0
  %v949 = vadd.f32 %v873, %v948
  %950 = vmatmul.bf16.gmra.mxu0 %v844
  %v951 = vpop.f32.mrf.mxu0
  %v952 = vadd.f32 %v873, %v951
  %v953 = vpop.f32.mrf.mxu0
  %v954 = vadd.f32 %v873, %v953
  %955 = vmatmul.bf16.gmra.mxu0 %v845
  %v956 = vpop.f32.mrf.mxu0
  %v957 = vadd.f32 %v873, %v956
  %v958 = vpop.f32.mrf.mxu0
  %v959 = vadd.f32 %v873, %v958
  %960 = vmatmul.bf16.gmra.mxu0 %v846
  %v961 = vpop.f32.mrf.mxu0
  %v962 = vadd.f32 %v873, %v961
  %v963 = vpop.f32.mrf.mxu0
  %v964 = vadd.f32 %v873, %v963
  %965 = vmatmul.bf16.gmra.mxu0 %v847
  %v966 = vpop.f32.mrf.mxu0
  %v967 = vadd.f32 %v873, %v966
  %v968 = vpop.f32.mrf.mxu0
  %v969 = vadd.f32 %v873, %v968
  %970 = vmatmul.bf16.gmra.mxu0 %v848
  %v971 = vpop.f32.mrf.mxu0
  %v972 = vadd.f32 %v873, %v971
  %v973 = vpop.f32.mrf.mxu0
  %v974 = vadd.f32 %v873, %v973
  %975 = vmatmul.bf16.gmra.mxu0 %v849
  %v976 = vpop.f32.mrf.mxu0
  %v977 = vadd.f32 %v873, %v976
  %v978 = vpop.f32.mrf.mxu0
  %v979 = vadd.f32 %v873, %v978
  %980 = vmatmul.bf16.gmra.mxu0 %v850
  %v981 = vpop.f32.mrf.mxu0
  %v982 = vadd.f32 %v873, %v981
  %v983 = vpop.f32.mrf.mxu0
  %v984 = vadd.f32 %v873, %v983
  %985 = vmatmul.bf16.gmra.mxu0 %v851
  %v986 = vpop.f32.mrf.mxu0
  %v987 = vadd.f32 %v873, %v986
  %v988 = vpop.f32.mrf.mxu0
  %v989 = vadd.f32 %v873, %v988
  %990 = vmatmul.bf16.gmra.mxu0 %v852
  %v991 = vpop.f32.mrf.mxu0
  %v992 = vadd.f32 %v873, %v991
  %v993 = vpop.f32.mrf.mxu0
  %v994 = vadd.f32 %v873, %v993
  %995 = vmatmul.bf16.gmra.mxu0 %v853
  %v996 = vpop.f32.mrf.mxu0
  %v997 = vadd.f32 %v873, %v996
  %v998 = vpop.f32.mrf.mxu0
  %v999 = vadd.f32 %v873, %v998
  %1000 = vmatmul.bf16.gmra.mxu0 %v854
  %v1001 = vpop.f32.mrf.mxu0
  %v1002 = vadd.f32 %v873, %v1001
  %v1003 = vpop.f32.mrf.mxu0
  %v1004 = vadd.f32 %v873, %v1003
  %1005 = vmatmul.bf16.gmra.mxu0 %v855
  %v1006 = vpop.f32.mrf.mxu0
  %v1007 = vadd.f32 %v873, %v1006
  %v1008 = vpop.f32.mrf.mxu0
  %v1009 = vadd.f32 %v873, %v1008
  %1010 = vdwg.mxu0
  %v1011 = vtanh.pop %v932
  %v1012 = vtanh.pop %v934
  %v1013 = vtanh.pop %v937
  %v1014 = vtanh.pop %v939
  %v1015 = vtanh.pop %v942
  %v1016 = vtanh.pop %v944
  %v1017 = vtanh.pop %v947
  %v1018 = vtanh.pop %v949
  %v1019 = vtanh.pop %v952
  %v1020 = vtanh.pop %v954
  %v1021 = vtanh.pop %v957
  %v1022 = vtanh.pop %v959
  %v1023 = vtanh.pop %v962
  %v1024 = vtanh.pop %v964
  %v1025 = vtanh.pop %v967
  %v1026 = vtanh.pop %v969
  %v1027 = vtanh.pop %v972
  %v1028 = vtanh.pop %v974
  %v1029 = vtanh.pop %v977
  %v1030 = vtanh.pop %v979
  %v1031 = vtanh.pop %v982
  %v1032 = vtanh.pop %v984
  %v1033 = vtanh.pop %v987
  %v1034 = vtanh.pop %v989
  %v1035 = vtanh.pop %v992
  %v1036 = vtanh.pop %v994
  %v1037 = vtanh.pop %v997
  %v1038 = vtanh.pop %v999
  %v1039 = vtanh.pop %v1002
  %v1040 = vtanh.pop %v1004
  %v1041 = vtanh.pop %v1007
  %v1042 = vtanh.pop %v1009
  %v1043 = vpack.c.bf16 %v1011, %v1011
  %v1044 = vpack.c.bf16 %v1012, %v1012
  %v1045 = vpack.c.bf16 %v1013, %v1013
  %v1046 = vpack.c.bf16 %v1014, %v1014
  %v1047 = vpack.c.bf16 %v1015, %v1015
  %v1048 = vpack.c.bf16 %v1016, %v1016
  %v1049 = vpack.c.bf16 %v1017, %v1017
  %v1050 = vpack.c.bf16 %v1018, %v1018
  %v1051 = vpack.c.bf16 %v1019, %v1019
  %v1052 = vpack.c.bf16 %v1020, %v1020
  %v1053 = vpack.c.bf16 %v1021, %v1021
  %v1054 = vpack.c.bf16 %v1022, %v1022
  %v1055 = vpack.c.bf16 %v1023, %v1023
  %v1056 = vpack.c.bf16 %v1024, %v1024
  %v1057 = vpack.c.bf16 %v1025, %v1025
  %v1058 = vpack.c.bf16 %v1026, %v1026
  %v1059 = vpack.c.bf16 %v1027, %v1027
  %v1060 = vpack.c.bf16 %v1028, %v1028
  %v1061 = vpack.c.bf16 %v1029, %v1029
  %v1062 = vpack.c.bf16 %v1030, %v1030
  %v1063 = vpack.c.bf16 %v1031, %v1031
  %v1064 = vpack.c.bf16 %v1032, %v1032
  %v1065 = vpack.c.bf16 %v1033, %v1033
  %v1066 = vpack.c.bf16 %v1034, %v1034
  %v1067 = vpack.c.bf16 %v1035, %v1035
  %v1068 = vpack.c.bf16 %v1036, %v1036
  %v1069 = vpack.c.bf16 %v1037, %v1037
  %v1070 = vpack.c.bf16 %v1038, %v1038
  %v1071 = vpack.c.bf16 %v1039, %v1039
  %v1072 = vpack.c.bf16 %v1040, %v1040
  %v1073 = vpack.c.bf16 %v1041, %v1041
  %v1074 = vpack.c.bf16 %v1042, %v1042
  %1075 = vst [vmem:[%s6] sm:$0xf] %v1043
  %1076 = vst [vmem:[%s6 + $0x4] sm:$0xf] %v1044
  %1077 = vst [vmem:[%s6 + $0x8] sm:$0xf] %v1045
  %1078 = vst [vmem:[%s6 + $0xc] sm:$0xf] %v1046
  %1079 = vst [vmem:[%s6 + $0x10] sm:$0xf] %v1047
  %1080 = vst [vmem:[%s6 + $0x14] sm:$0xf] %v1048
  %1081 = vst [vmem:[%s6 + $0x18] sm:$0xf] %v1049
  %1082 = vst [vmem:[%s6 + $0x1c] sm:$0xf] %v1050
  %1083 = vst [vmem:[%s6 + $0x20] sm:$0xf] %v1051
  %1084 = vst [vmem:[%s6 + $0x24] sm:$0xf] %v1052
  %1085 = vst [vmem:[%s6 + $0x28] sm:$0xf] %v1053
  %1086 = vst [vmem:[%s6 + $0x2c] sm:$0xf] %v1054
  %1087 = vst [vmem:[%s6 + $0x30] sm:$0xf] %v1055
  %1088 = vst [vmem:[%s6 + $0x34] sm:$0xf] %v1056
  %1089 = vst [vmem:[%s6 + $0x38] sm:$0xf] %v1057
  %1090 = vst [vmem:[%s6 + $0x3c] sm:$0xf] %v1058
  %1091 = vst [vmem:[%s6 + $0x40] sm:$0xf] %v1059
  %1092 = vst [vmem:[%s6 + $0x44] sm:$0xf] %v1060
  %1093 = vst [vmem:[%s6 + $0x48] sm:$0xf] %v1061
  %1094 = vst [vmem:[%s6 + $0x4c] sm:$0xf] %v1062
  %1095 = vst [vmem:[%s6 + $0x50] sm:$0xf] %v1063
  %1096 = vst [vmem:[%s6 + $0x54] sm:$0xf] %v1064
  %1097 = vst [vmem:[%s6 + $0x58] sm:$0xf] %v1065
  %1098 = vst [vmem:[%s6 + $0x5c] sm:$0xf] %v1066
  %1099 = vst [vmem:[%s6 + $0x60] sm:$0xf] %v1067
  %1100 = vst [vmem:[%s6 + $0x64] sm:$0xf] %v1068
  %1101 = vst [vmem:[%s6 + $0x68] sm:$0xf] %v1069
  %1102 = vst [vmem:[%s6 + $0x6c] sm:$0xf] %v1070
  %1103 = vst [vmem:[%s6 + $0x70] sm:$0xf] %v1071
  %1104 = vst [vmem:[%s6 + $0x74] sm:$0xf] %v1072
  %1105 = vst [vmem:[%s6 + $0x78] sm:$0xf] %v1073
  %1106 = vst [vmem:[%s6 + $0x7c] sm:$0xf] %v1074
  // Predicated region
  $region26: #{_forward_impl.1} parent=0 // pred_check
    _
  $region27: #{_forward_impl.1} parent=0 // pred_check_branch
    %1108 = sbr.rel (0) target = $region29
  $region28: #{_forward_impl.1} parent=0 // pred_region
    _
  $region29: #{_forward_impl.1} parent=0 // pred_fallthru
    _
  // Predicated region
  $region30: #{_forward_impl.1} parent=0 // pred_check
    _
  $region31: #{_forward_impl.1} parent=0 // pred_check_branch
    %1110 = sbr.rel (0) target = $region33
  $region32: #{_forward_impl.1} parent=0 // pred_region
    _
  $region33: #{_forward_impl.1} parent=0 // pred_fallthru
    _

</llo_original>
